<compile_context>
chip_gen: v6e
topology: v6e:2x2x1
jax: 0.10.0
libtpu: 0.0.40
codegen_flags: <defaults>
</compile_context>

<pallas_src>
import jax
import jax.numpy as jnp
from jax.experimental import pallas as pl
from jax.experimental.pallas import tpu as pltpu


def _action_value_distri_kernel(obs_ref, act_ref,
                                w1o_ref, w1a_ref, b1_ref,
                                w2_ref, b2_ref,
                                w3t_ref, b3t_ref,
                                out_ref):
    """One batch tile: fused-concat MLP -> lane-dense (2, TB) = [mean | softplus(std)]^T."""
    # Layer 1: concat(obs, act) @ W1 == obs @ W1_obs + act @ W1_act.
    # Operands go to the MXU in their storage dtype; accumulate in f32.
    h1 = jnp.dot(obs_ref[...], w1o_ref[...], preferred_element_type=jnp.float32)
    h1 = h1 + jnp.dot(act_ref[...], w1a_ref[...], preferred_element_type=jnp.float32)
    h1 = jnp.maximum(h1 + b1_ref[...], 0.0)

    # Layer 2: Linear + ReLU.
    h2 = jnp.dot(h1.astype(w2_ref.dtype), w2_ref[...],
                 preferred_element_type=jnp.float32) + b2_ref[...]
    h2 = jnp.maximum(h2, 0.0)

    # Output layer, computed TRANSPOSED so the result is lane-dense:
    #   q_t[o, b] = sum_k w3t[o, k] * h2[b, k]   ->  (2, TB)
    q_t = jax.lax.dot_general(
        w3t_ref[...], h2.astype(w3t_ref.dtype),
        (((1,), (1,)), ((), ())),
        preferred_element_type=jnp.float32) + b3t_ref[...]

    # Numerically-stable softplus on row 1 only (row 0 = value_mean, identity).
    sp = jnp.maximum(q_t, 0.0) + jnp.log1p(jnp.exp(-jnp.abs(q_t)))
    row = jax.lax.broadcasted_iota(jnp.int32, q_t.shape, 0)
    out_ref[...] = jnp.where(row == 0, q_t, sp).astype(out_ref.dtype)


def _round_up(x, m):
    return ((x + m - 1) // m) * m


def action_value_distri_forward(obs, act, params, *, block_b=2048):
    """forward(obs, act) -> [B, 2] = concat(value_mean, softplus(value_std))."""
    assert block_b % 128 == 0, "multi-tile grids need a lane-aligned batch tile"
    w1o, w1a, b1, w2, b2, w3, b3 = params
    B, obs_dim = obs.shape
    act_dim = act.shape[-1]
    h1_dim = w1o.shape[-1]
    h2_dim = w2.shape[-1]

    # Weights feed the MXU in the input dtype (bf16 in -> bf16 weights, no up-cast);
    # biases stay f32 since they are added to the f32 accumulator.
    cdt = obs.dtype
    w1o, w1a, w2 = (w.astype(cdt) for w in (w1o, w1a, w2))
    w3t = w3.T.astype(cdt)           # (2, h2) for the transposed output layer
    b1 = b1.astype(jnp.float32)
    b2 = b2.astype(jnp.float32)
    b3t = b3.T.astype(jnp.float32)   # (2, 1)

    # Batch tile: biggest that comfortably fits scoped VMEM. Multi-tile grids need
    # tb % 128 == 0 (lane-dense (2, tb) output blocks); a single-tile small batch only
    # needs a sublane multiple of 8 (block == full array dim satisfies the constraint).
    tb = block_b if B > block_b else _round_up(B, 8)
    bp = pl.cdiv(B, tb) * tb
    if bp != B:
        # Padded rows are computed but sliced off; never returned.
        obs = jnp.pad(obs, ((0, bp - B), (0, 0)))
        act = jnp.pad(act, ((0, bp - B), (0, 0)))

    # Explicit VMEM budget: lane-padded (tb,128) input tiles x2 (double-buffered),
    # f32 (tb,128) h1/h2 intermediates, (2,tb) f32 output x2, plus headroom.
    in_item = jnp.dtype(cdt).itemsize
    per_row = (2 * 2 * 128 * in_item    # obs + act tiles, double-buffered, lane-padded
               + 2 * 128 * 4            # h1 / h2 f32 intermediates
               + 2 * 2 * 4)             # (2, tb) f32 output, double-buffered
    vmem_limit = int(min(max(tb * per_row + (2 << 20), 16 << 20), 48 << 20))

    in_dim = obs_dim + act_dim
    cost = pl.CostEstimate(
        flops=2 * B * (in_dim * h1_dim + h1_dim * h2_dim + h2_dim * 2),
        transcendentals=4 * B,
        bytes_accessed=B * (in_dim * in_item + 2 * 4)
        + sum(int(w.size) * in_item for w in (w1o, w1a, w2, w3t)),
    )

    def tile_spec(feat):
        return pl.BlockSpec((tb, feat), lambda i: (i, 0))

    def resident_spec(shape):
        # Same block every grid step -> stays resident in VMEM, no re-fetch.
        return pl.BlockSpec(shape, lambda i: (0,) * len(shape))

    out_t = pl.pallas_call(
        _action_value_distri_kernel,
        out_shape=jax.ShapeDtypeStruct((2, bp), jnp.float32),
        grid=(bp // tb,),
        in_specs=[
            tile_spec(obs_dim), tile_spec(act_dim),
            resident_spec(w1o.shape), resident_spec(w1a.shape), resident_spec(b1.shape),
            resident_spec(w2.shape), resident_spec(b2.shape),
            resident_spec(w3t.shape), resident_spec(b3t.shape),
        ],
        out_specs=pl.BlockSpec((2, tb), lambda i: (0, i)),
        compiler_params=pltpu.CompilerParams(
            dimension_semantics=("parallel",),
            vmem_limit_bytes=vmem_limit),
        cost_estimate=cost,
    )(obs, act, w1o, w1a, b1, w2, b2, w3t, b3t)

    # Lane-dense (2, bp) kernel output -> module's (B, 2) contract (tiny XLA transpose).
    return out_t.T[:B]


def init_params(key, obs_dim, act_dim, hidden_sizes):
    """PyTorch nn.Linear-style init; weights stored [in, out], biases [1, out]."""
    sizes = [obs_dim + act_dim] + list(hidden_sizes) + [2]
    raw = []
    for j in range(len(sizes) - 1):
        fan_in, fan_out = sizes[j], sizes[j + 1]
        key, kw, kb = jax.random.split(key, 3)
        bound = 1.0 / (fan_in ** 0.5)
        w = jax.random.uniform(kw, (fan_in, fan_out), jnp.float32, -bound, bound)
        b = jax.random.uniform(kb, (1, fan_out), jnp.float32, -bound, bound)
        raw += [w, b]
    w1, b1, w2, b2, w3, b3 = raw
    # Split the first layer so the kernel fuses the obs/act concat.
    w1o, w1a = w1[:obs_dim], w1[obs_dim:]
    return (w1o, w1a, b1, w2, b2, w3, b3)


if __name__ == "__main__":
    obs_dim, act_dim = 16, 8
    hidden_sizes = (32, 32)
    batch = 8

    key = jax.random.PRNGKey(0)
    k_obs, k_act, k_par = jax.random.split(key, 3)
    obs = jax.random.normal(k_obs, (batch, obs_dim), jnp.float32)
    act = jax.random.normal(k_act, (batch, act_dim), jnp.float32)
    params = init_params(k_par, obs_dim, act_dim, hidden_sizes)

    out = action_value_distri_forward(obs, act, params)
    jax.block_until_ready(out)

    # Pure-JAX reference of the same math (explicit concat version).
    w1o, w1a, b1, w2, b2, w3, b3 = params
    x = jnp.concatenate([obs, act], axis=-1)
    w1 = jnp.concatenate([w1o, w1a], axis=0)
    h = jnp.maximum(x @ w1 + b1, 0.0)
    h = jnp.maximum(h @ w2 + b2, 0.0)
    logits = h @ w3 + b3
    ref = jnp.concatenate([logits[:, :1], jax.nn.softplus(logits[:, 1:])], axis=-1)

    assert out.shape == (batch, 2)
    assert jnp.allclose(out, ref, atol=1e-5, rtol=1e-5), float(jnp.max(jnp.abs(out - ref)))

    print("KERNEL_OK")
</pallas_src>

<mosaic_0001>
module attributes {stable_mosaic.version = 11 : i64} {
  func.func @_action_value_distri_kernel(%arg0: i32, %arg1: memref<8x16xf32, #tpu.memory_space<vmem>>, %arg2: memref<8x8xf32, #tpu.memory_space<vmem>>, %arg3: memref<16x32xf32, #tpu.memory_space<vmem>>, %arg4: memref<8x32xf32, #tpu.memory_space<vmem>>, %arg5: memref<1x32xf32, #tpu.memory_space<vmem>>, %arg6: memref<32x32xf32, #tpu.memory_space<vmem>>, %arg7: memref<1x32xf32, #tpu.memory_space<vmem>>, %arg8: memref<2x32xf32, #tpu.memory_space<vmem>>, %arg9: memref<2x1xf32, #tpu.memory_space<vmem>>, %arg10: memref<2x8xf32, #tpu.memory_space<vmem>>) attributes {dimension_semantics = [#tpu.dimension_semantics<parallel>], iteration_bounds = array<i64: 1>, scalar_prefetch = 0 : i64, scratch_operands = 0 : i64, tpu.core_type = #tpu.core_type<tc>, window_params = [{transform_indices = @transform_0, window_bounds = array<i64: 8, 16>}, {transform_indices = @transform_1, window_bounds = array<i64: 8, 8>}, {pipeline_mode = #tpu.pipeline_mode<synchronous>, transform_indices = @transform_2, window_bounds = array<i64: 16, 32>}, {pipeline_mode = #tpu.pipeline_mode<synchronous>, transform_indices = @transform_3, window_bounds = array<i64: 8, 32>}, {pipeline_mode = #tpu.pipeline_mode<synchronous>, transform_indices = @transform_4, window_bounds = array<i64: 1, 32>}, {pipeline_mode = #tpu.pipeline_mode<synchronous>, transform_indices = @transform_5, window_bounds = array<i64: 32, 32>}, {pipeline_mode = #tpu.pipeline_mode<synchronous>, transform_indices = @transform_6, window_bounds = array<i64: 1, 32>}, {pipeline_mode = #tpu.pipeline_mode<synchronous>, transform_indices = @transform_7, window_bounds = array<i64: 2, 32>}, {pipeline_mode = #tpu.pipeline_mode<synchronous>, transform_indices = @transform_8, window_bounds = array<i64: 2, 1>}, {transform_indices = @transform_9, window_bounds = array<i64: 2, 8>}]} {
    %c0 = arith.constant 0 : index
    %c0_0 = arith.constant 0 : index
    %0 = vector.load %arg1[%c0, %c0_0] : memref<8x16xf32, #tpu.memory_space<vmem>>, vector<8x16xf32>
    %c0_1 = arith.constant 0 : index
    %c0_2 = arith.constant 0 : index
    %1 = vector.load %arg3[%c0_1, %c0_2] : memref<16x32xf32, #tpu.memory_space<vmem>>, vector<16x32xf32>
    %cst = arith.constant dense<0.000000e+00> : vector<8x32xf32>
    %2 = tpu.matmul %0, %1, %cst {dimension_numbers = #tpu.dot_dimension_numbers<[1], [0], [0], [1], [0, 0, 1, 1], [], []>} : vector<8x16xf32>, vector<16x32xf32>, vector<8x32xf32> -> vector<8x32xf32>
    %c0_3 = arith.constant 0 : index
    %c0_4 = arith.constant 0 : index
    %3 = vector.load %arg2[%c0_3, %c0_4] : memref<8x8xf32, #tpu.memory_space<vmem>>, vector<8x8xf32>
    %c0_5 = arith.constant 0 : index
    %c0_6 = arith.constant 0 : index
    %4 = vector.load %arg4[%c0_5, %c0_6] : memref<8x32xf32, #tpu.memory_space<vmem>>, vector<8x32xf32>
    %cst_7 = arith.constant dense<0.000000e+00> : vector<8x32xf32>
    %5 = tpu.matmul %3, %4, %cst_7 {dimension_numbers = #tpu.dot_dimension_numbers<[1], [0], [0], [1], [0, 0, 1, 1], [], []>} : vector<8x8xf32>, vector<8x32xf32>, vector<8x32xf32> -> vector<8x32xf32>
    %6 = arith.addf %2, %5 : vector<8x32xf32>
    %c0_8 = arith.constant 0 : index
    %c0_9 = arith.constant 0 : index
    %7 = vector.load %arg5[%c0_8, %c0_9] : memref<1x32xf32, #tpu.memory_space<vmem>>, vector<1x32xf32>
    %8 = vector.broadcast %7 : vector<1x32xf32> to vector<8x32xf32>
    %9 = arith.addf %6, %8 : vector<8x32xf32>
    %cst_10 = arith.constant 0.000000e+00 : f32
    %10 = vector.broadcast %cst_10 : f32 to vector<8x32xf32>
    %11 = arith.maximumf %9, %10 : vector<8x32xf32>
    %c0_11 = arith.constant 0 : index
    %c0_12 = arith.constant 0 : index
    %12 = vector.load %arg6[%c0_11, %c0_12] : memref<32x32xf32, #tpu.memory_space<vmem>>, vector<32x32xf32>
    %cst_13 = arith.constant dense<0.000000e+00> : vector<8x32xf32>
    %13 = tpu.matmul %11, %12, %cst_13 {dimension_numbers = #tpu.dot_dimension_numbers<[1], [0], [0], [1], [0, 0, 1, 1], [], []>} : vector<8x32xf32>, vector<32x32xf32>, vector<8x32xf32> -> vector<8x32xf32>
    %c0_14 = arith.constant 0 : index
    %c0_15 = arith.constant 0 : index
    %14 = vector.load %arg7[%c0_14, %c0_15] : memref<1x32xf32, #tpu.memory_space<vmem>>, vector<1x32xf32>
    %15 = vector.broadcast %14 : vector<1x32xf32> to vector<8x32xf32>
    %16 = arith.addf %13, %15 : vector<8x32xf32>
    %cst_16 = arith.constant 0.000000e+00 : f32
    %17 = vector.broadcast %cst_16 : f32 to vector<8x32xf32>
    %18 = arith.maximumf %16, %17 : vector<8x32xf32>
    %c0_17 = arith.constant 0 : index
    %c0_18 = arith.constant 0 : index
    %19 = vector.load %arg8[%c0_17, %c0_18] : memref<2x32xf32, #tpu.memory_space<vmem>>, vector<2x32xf32>
    %cst_19 = arith.constant dense<0.000000e+00> : vector<2x8xf32>
    %20 = tpu.matmul %19, %18, %cst_19 {dimension_numbers = #tpu.dot_dimension_numbers<[1], [1], [0], [0], [0, 0, 1, 0], [], []>} : vector<2x32xf32>, vector<8x32xf32>, vector<2x8xf32> -> vector<2x8xf32>
    %c0_20 = arith.constant 0 : index
    %c0_21 = arith.constant 0 : index
    %21 = vector.load %arg9[%c0_20, %c0_21] : memref<2x1xf32, #tpu.memory_space<vmem>>, vector<2x1xf32>
    %22 = vector.broadcast %21 : vector<2x1xf32> to vector<2x8xf32>
    %23 = arith.addf %20, %22 : vector<2x8xf32>
    %cst_22 = arith.constant 0.000000e+00 : f32
    %24 = vector.broadcast %cst_22 : f32 to vector<2x8xf32>
    %25 = arith.maximumf %23, %24 : vector<2x8xf32>
    %26 = math.absf %23 : vector<2x8xf32>
    %cst_23 = arith.constant 0.000000e+00 : f32
    %27 = vector.broadcast %cst_23 : f32 to vector<2x8xf32>
    %28 = arith.subf %27, %26 : vector<2x8xf32>
    %29 = math.exp %28 : vector<2x8xf32>
    %30 = math.log1p %29 : vector<2x8xf32>
    %31 = arith.addf %25, %30 : vector<2x8xf32>
    %32 = tpu.iota {dimensions = array<i32: 0>} : vector<2x8xi32>
    %c0_i32 = arith.constant 0 : i32
    %33 = vector.broadcast %c0_i32 : i32 to vector<2x8xi32>
    %34 = arith.cmpi eq, %32, %33 : vector<2x8xi32>
    %35 = arith.select %34, %23, %31 : vector<2x8xi1>, vector<2x8xf32>
    %c0_24 = arith.constant 0 : index
    %c0_25 = arith.constant 0 : index
    %36 = vector.load %arg10[%c0_24, %c0_25] : memref<2x8xf32, #tpu.memory_space<vmem>>, vector<2x8xf32>
    tpu.vector_store %arg10[%c0_24, %c0_25], %35 {strides = array<i32>} : memref<2x8xf32, #tpu.memory_space<vmem>>, vector<2x8xf32>,
    return
  }
  func.func @transform_0(%arg0: i32) -> (i32, i32) {
    %c0_i32 = arith.constant 0 : i32
    %c0_i32_0 = arith.constant 0 : i32
    return %arg0, %c0_i32 : i32, i32
  }
  func.func @transform_1(%arg0: i32) -> (i32, i32) {
    %c0_i32 = arith.constant 0 : i32
    %c0_i32_0 = arith.constant 0 : i32
    return %arg0, %c0_i32 : i32, i32
  }
  func.func @transform_2(%arg0: i32) -> (i32, i32) {
    %c0_i32 = arith.constant 0 : i32
    %c0_i32_0 = arith.constant 0 : i32
    %c0_i32_1 = arith.constant 0 : i32
    return %c0_i32, %c0_i32_0 : i32, i32
  }
  func.func @transform_3(%arg0: i32) -> (i32, i32) {
    %c0_i32 = arith.constant 0 : i32
    %c0_i32_0 = arith.constant 0 : i32
    %c0_i32_1 = arith.constant 0 : i32
    return %c0_i32, %c0_i32_0 : i32, i32
  }
  func.func @transform_4(%arg0: i32) -> (i32, i32) {
    %c0_i32 = arith.constant 0 : i32
    %c0_i32_0 = arith.constant 0 : i32
    %c0_i32_1 = arith.constant 0 : i32
    return %c0_i32, %c0_i32_0 : i32, i32
  }
  func.func @transform_5(%arg0: i32) -> (i32, i32) {
    %c0_i32 = arith.constant 0 : i32
    %c0_i32_0 = arith.constant 0 : i32
    %c0_i32_1 = arith.constant 0 : i32
    return %c0_i32, %c0_i32_0 : i32, i32
  }
  func.func @transform_6(%arg0: i32) -> (i32, i32) {
    %c0_i32 = arith.constant 0 : i32
    %c0_i32_0 = arith.constant 0 : i32
    %c0_i32_1 = arith.constant 0 : i32
    return %c0_i32, %c0_i32_0 : i32, i32
  }
  func.func @transform_7(%arg0: i32) -> (i32, i32) {
    %c0_i32 = arith.constant 0 : i32
    %c0_i32_0 = arith.constant 0 : i32
    %c0_i32_1 = arith.constant 0 : i32
    return %c0_i32, %c0_i32_0 : i32, i32
  }
  func.func @transform_8(%arg0: i32) -> (i32, i32) {
    %c0_i32 = arith.constant 0 : i32
    %c0_i32_0 = arith.constant 0 : i32
    %c0_i32_1 = arith.constant 0 : i32
    return %c0_i32, %c0_i32_0 : i32, i32
  }
  func.func @transform_9(%arg0: i32) -> (i32, i32) {
    %c0_i32 = arith.constant 0 : i32
    %c0_i32_0 = arith.constant 0 : i32
    return %c0_i32, %arg0 : i32, i32
  }
}

</mosaic_0001>

<llo_original>
// kernel: tpu_custom_call.1
$region0: #{tpu_custom_call.1}
  #allocation0 [shape = 'u32[]', space=smem, size = 0x4, offset = 0x4, fixed_abs, tag = 'smem constant byte address 0x4 - core index']
  #allocation1 [shape = 'u32[144,128]{1,0:T(1,128)}', space=vmem, size = 0x12000, scoped, tag = 'internal scratch']
  %s0 = inlined_call_operand.hbm [shape: f32[8,16], index: 0, kind: input, shape index: {}]
  %s1 = inlined_call_operand.hbm [shape: f32[8,8], index: 1, kind: input, shape index: {}]
  %s2 = inlined_call_operand.hbm [shape: f32[16,32], index: 2, kind: input, shape index: {}]
  %s3 = inlined_call_operand.vmem [shape: f32[8,32], index: 3, kind: input, shape index: {}]
  %s4 = inlined_call_operand.hbm [shape: f32[1,32], index: 4, kind: input, shape index: {}]
  %s5 = inlined_call_operand.hbm [shape: f32[32,32], index: 5, kind: input, shape index: {}]
  %s6 = inlined_call_operand.vmem [shape: f32[1,32], index: 6, kind: input, shape index: {}]
  %s7 = inlined_call_operand.vmem [shape: f32[2,32], index: 7, kind: input, shape index: {}]
  %s8 = inlined_call_operand.vmem [shape: f32[2,1], index: 8, kind: input, shape index: {}]
  %s9 = inlined_call_operand.hbm [shape: f32[2,8], index: 9, kind: output, shape index: {}]
  %s10 = sld [smem:[#allocation0]]
  $region66: #{tpu_custom_call.1} parent=0
    _
  %s12 = ssub.s32 1, %s10
  %s13 = scalar_select 0, %s12, %s10
  $region1: #{tpu_custom_call.1} parent=0
    #allocation2 [shape = 'u8[4096]{0}', space=vmem, size = 0x1000, scoped, tag = 'input window, operand 0, single buffered']
    #allocation3 [shape = 's32[1]{0}', space=sflag, size = 0x4, scoped, tag = 'scoped memory for tpu_custom_call.1']
    #allocation4 [shape = 's32[1]{0}', space=sflag, size = 0x4, scoped, tag = 'scoped memory for tpu_custom_call.1']
    #allocation5 [shape = 'u8[4096]{0}', space=vmem, size = 0x1000, scoped, tag = 'input window, operand 1, single buffered']
    #allocation6 [shape = 's32[1]{0}', space=sflag, size = 0x4, scoped, tag = 'scoped memory for tpu_custom_call.1']
    #allocation7 [shape = 'u8[8192]{0}', space=vmem, size = 0x2000, scoped, tag = 'input window, operand 2, single buffered']
    #allocation8 [shape = 'u8[512]{0}', space=vmem, size = 0x400, scoped, tag = 'input window, operand 4, single buffered']
    #allocation9 [shape = 's32[1]{0}', space=sflag, size = 0x4, scoped, tag = 'scoped memory for tpu_custom_call.1']
    #allocation10 [shape = 'u8[16384]{0}', space=vmem, size = 0x4000, scoped, tag = 'input window, operand 5, single buffered']
    #allocation11 [shape = 'u8[1024]{0}', space=vmem, size = 0x400, scoped, tag = 'output window, operand 0, single buffered']
    %14 = vsyncpa [#allocation3], 0
    %15 = vsyncpa [#allocation6], 0
    %16 = vsyncpa [#allocation9], 0
    %17 = vsyncpa [#allocation4], 0
    // Predicated region
    $region2: #{tpu_custom_call.1} parent=1 // pred_check
      _
    $region3: #{tpu_custom_call.1} parent=1 // pred_check_branch
      %19 = sbr.rel (0) target = $region5
    $region4: #{tpu_custom_call.1} parent=1 // pred_region
      %s21 = ssub.s32 128, 128
      %22 = vsyncadd [#allocation3], %s21
      %s24 = sshll.u32 [#allocation2], 4
      %s25 = int_to_ptr.vmem [resolvable:$true] %s24
      %27 = dma.hbm_to_vmem [thread:$0]  %s0, 128, %s25, [#allocation3]
    $region5: #{tpu_custom_call.1} parent=1 // pred_fallthru
      _
    // Predicated region
    $region6: #{tpu_custom_call.1} parent=1 // pred_check
      _
    $region7: #{tpu_custom_call.1} parent=1 // pred_check_branch
      %29 = sbr.rel (0) target = $region9
    $region8: #{tpu_custom_call.1} parent=1 // pred_region
      %s31 = ssub.s32 128, 128
      %32 = vsyncadd [#allocation6], %s31
      %s34 = sshll.u32 [#allocation5], 4
      %s35 = int_to_ptr.vmem [resolvable:$true] %s34
      %37 = dma.hbm_to_vmem [thread:$0]  %s1, 128, %s35, [#allocation6]
    $region9: #{tpu_custom_call.1} parent=1 // pred_fallthru
      _
    // Predicated region
    $region10: #{tpu_custom_call.1} parent=1 // pred_check
      _
    $region11: #{tpu_custom_call.1} parent=1 // pred_check_branch
      %39 = sbr.rel (0) target = $region13
    $region12: #{tpu_custom_call.1} parent=1 // pred_region
      %s41 = ssub.s32 256, 256
      %42 = vsyncadd [#allocation6], %s41
      %s43 = sshll.u32 [#allocation7], 4
      %s44 = int_to_ptr.vmem [resolvable:$true] %s43
      %49 = dma.hbm_to_vmem [thread:$0]  %s2, 256, %s44, [#allocation6], 128, 128, 8
    $region13: #{tpu_custom_call.1} parent=1 // pred_fallthru
      _
    // Predicated region
    $region14: #{tpu_custom_call.1} parent=1 // pred_check
      _
    $region15: #{tpu_custom_call.1} parent=1 // pred_check_branch
      %51 = sbr.rel (0) target = $region17
    $region16: #{tpu_custom_call.1} parent=1 // pred_region
      _
    $region17: #{tpu_custom_call.1} parent=1 // pred_fallthru
      _
    // Predicated region
    $region18: #{tpu_custom_call.1} parent=1 // pred_check
      _
    $region19: #{tpu_custom_call.1} parent=1 // pred_check_branch
      %53 = sbr.rel (0) target = $region21
    $region20: #{tpu_custom_call.1} parent=1 // pred_region
      %s55 = ssub.s32 16, 16
      %56 = vsyncadd [#allocation9], %s55
      %s58 = sshll.u32 [#allocation8], 4
      %s59 = int_to_ptr.vmem [resolvable:$true] %s58
      %61 = dma.hbm_to_vmem [thread:$0]  %s4, 16, %s59, [#allocation9]
    $region21: #{tpu_custom_call.1} parent=1 // pred_fallthru
      _
    // Predicated region
    $region22: #{tpu_custom_call.1} parent=1 // pred_check
      _
    $region23: #{tpu_custom_call.1} parent=1 // pred_check_branch
      %63 = sbr.rel (0) target = $region25
    $region24: #{tpu_custom_call.1} parent=1 // pred_region
      %s65 = ssub.s32 512, 512
      %66 = vsyncadd [#allocation9], %s65
      %s67 = sshll.u32 [#allocation10], 4
      %s68 = int_to_ptr.vmem [resolvable:$true] %s67
      %73 = dma.hbm_to_vmem [thread:$0]  %s5, 512, %s68, [#allocation9], 128, 128, 8
    $region25: #{tpu_custom_call.1} parent=1 // pred_fallthru
      _
    // Predicated region
    $region26: #{tpu_custom_call.1} parent=1 // pred_check
      _
    $region27: #{tpu_custom_call.1} parent=1 // pred_check_branch
      %75 = sbr.rel (0) target = $region29
    $region28: #{tpu_custom_call.1} parent=1 // pred_region
      _
    $region29: #{tpu_custom_call.1} parent=1 // pred_fallthru
      _
    // Predicated region
    $region30: #{tpu_custom_call.1} parent=1 // pred_check
      _
    $region31: #{tpu_custom_call.1} parent=1 // pred_check_branch
      %77 = sbr.rel (0) target = $region33
    $region32: #{tpu_custom_call.1} parent=1 // pred_region
      _
    $region33: #{tpu_custom_call.1} parent=1 // pred_fallthru
      _
    // Predicated region
    $region34: #{tpu_custom_call.1} parent=1 // pred_check
      _
    $region35: #{tpu_custom_call.1} parent=1 // pred_check_branch
      %79 = sbr.rel (0) target = $region37
    $region36: #{tpu_custom_call.1} parent=1 // pred_region
      _
    $region37: #{tpu_custom_call.1} parent=1 // pred_fallthru
      _
    // Predicated region
    $region38: #{tpu_custom_call.1} parent=1 // pred_check
      _
    $region39: #{tpu_custom_call.1} parent=1 // pred_check_branch
      %81 = sbr.rel (0) target = $region41
    $region40: #{tpu_custom_call.1} parent=1 // pred_region
      %82 = dma.done [#allocation3], 128
    $region41: #{tpu_custom_call.1} parent=1 // pred_fallthru
      _
    // Predicated region
    $region42: #{tpu_custom_call.1} parent=1 // pred_check
      _
    $region43: #{tpu_custom_call.1} parent=1 // pred_check_branch
      %84 = sbr.rel (0) target = $region45
    $region44: #{tpu_custom_call.1} parent=1 // pred_region
      %85 = dma.done [#allocation6], 128
    $region45: #{tpu_custom_call.1} parent=1 // pred_fallthru
      _
    // Predicated region
    $region46: #{tpu_custom_call.1} parent=1 // pred_check
      _
    $region47: #{tpu_custom_call.1} parent=1 // pred_check_branch
      %87 = sbr.rel (0) target = $region49
    $region48: #{tpu_custom_call.1} parent=1 // pred_region
      %88 = dma.done [#allocation6], 256
    $region49: #{tpu_custom_call.1} parent=1 // pred_fallthru
      _
    // Predicated region
    $region50: #{tpu_custom_call.1} parent=1 // pred_check
      _
    $region51: #{tpu_custom_call.1} parent=1 // pred_check_branch
      %90 = sbr.rel (0) target = $region53
    $region52: #{tpu_custom_call.1} parent=1 // pred_region
      %91 = dma.done [#allocation9], 16
    $region53: #{tpu_custom_call.1} parent=1 // pred_fallthru
      _
    // Predicated region
    $region54: #{tpu_custom_call.1} parent=1 // pred_check
      _
    $region55: #{tpu_custom_call.1} parent=1 // pred_check_branch
      %93 = sbr.rel (0) target = $region57
    $region56: #{tpu_custom_call.1} parent=1 // pred_region
      %94 = dma.done [#allocation9], 512
    $region57: #{tpu_custom_call.1} parent=1 // pred_fallthru
      _
    %v95 = vld [vmem:[#allocation2] sm:$0xff]
    %v96 = vld [vmem:[#allocation7] sm:$0xff]
    %v97 = vld [vmem:[#allocation7 + $0x8] sm:$0xff]
    %v98 = vld [vmem:[#allocation5] sm:$0xff]
    %v99 = vld [vmem:[%s3] sm:$0xff]
    %vm100 = vcmask 64512
    %v102 = vsel %vm100, %v98, 0
    %104 = vmatprep.subr.mxu0 0.0
    %105 = vmatpush1.msra.mxu0 0.0
    %106 = vmatprep.subr.mxu0 0.0
    %107 = vmatpush1.msra.mxu0 0.0
    %108 = vmatprep.subr.mxu0 0.0
    %109 = vmatpush1.msra.mxu0 0.0
    %110 = vmatprep.subr.mxu0 0.0
    %111 = vmatpush1.msra.mxu0 0.0
    %112 = vmatprep.subr.mxu0 0.0
    %113 = vmatpush1.msra.mxu0 0.0
    %114 = vmatprep.subr.mxu0 0.0
    %115 = vmatpush1.msra.mxu0 0.0
    %116 = vmatprep.subr.mxu0 0.0
    %117 = vmatpush1.msra.mxu0 0.0
    %118 = vmatprep.subr.mxu0 0.0
    %119 = vmatpush1.msra.mxu0 0.0
    %120 = vmatprep.subr.mxu0 0.0
    %121 = vmatpush1.msra.mxu0 0.0
    %122 = vmatprep.subr.mxu0 0.0
    %123 = vmatpush1.msra.mxu0 0.0
    %124 = vmatprep.subr.mxu0 0.0
    %125 = vmatpush1.msra.mxu0 0.0
    %126 = vmatprep.subr.mxu0 0.0
    %127 = vmatpush1.msra.mxu0 0.0
    %128 = vmatprep.subr.mxu0 0.0
    %129 = vmatpush1.msra.mxu0 0.0
    %130 = vmatprep.subr.mxu0 0.0
    %131 = vmatpush1.msra.mxu0 0.0
    %132 = vmatprep.subr.mxu0 0.0
    %133 = vmatpush1.msra.mxu0 0.0
    %134 = vmatprep.subr.mxu0 0.0
    %135 = vmatpush1.msra.mxu0 %v99
    %136 = vmatprep.subr.mxu0 0.0
    %137 = vmatpush2.msra.mxu0 0.0
    %138 = vmatprep.subr.mxu0 0.0
    %139 = vmatpush2.msra.mxu0 0.0
    %140 = vmatprep.subr.mxu0 0.0
    %141 = vmatpush2.msra.mxu0 0.0
    %142 = vmatprep.subr.mxu0 0.0
    %143 = vmatpush2.msra.mxu0 0.0
    %144 = vmatprep.subr.mxu0 0.0
    %145 = vmatpush2.msra.mxu0 0.0
    %146 = vmatprep.subr.mxu0 0.0
    %147 = vmatpush2.msra.mxu0 0.0
    %148 = vmatprep.subr.mxu0 0.0
    %149 = vmatpush2.msra.mxu0 0.0
    %150 = vmatprep.subr.mxu0 0.0
    %151 = vmatpush2.msra.mxu0 0.0
    %152 = vmatprep.subr.mxu0 0.0
    %153 = vmatpush2.msra.mxu0 0.0
    %154 = vmatprep.subr.mxu0 0.0
    %155 = vmatpush2.msra.mxu0 0.0
    %156 = vmatprep.subr.mxu0 0.0
    %157 = vmatpush2.msra.mxu0 0.0
    %158 = vmatprep.subr.mxu0 0.0
    %159 = vmatpush2.msra.mxu0 0.0
    %160 = vmatprep.subr.mxu0 0.0
    %161 = vmatpush2.msra.mxu0 0.0
    %162 = vmatprep.subr.mxu0 0.0
    %163 = vmatpush2.msra.mxu0 0.0
    %164 = vmatprep.subr.mxu0 0.0
    %165 = vmatpush2.msra.mxu0 0.0
    %166 = vmatprep.subr.mxu0 0.0
    %167 = vmatpush2.msra.mxu0 0.0
    %168 = vmatprep.mubr.f32.mxu0 0.0
    %169 = vmatmul.mubr.f32.gmra.mxu0 %v102
    %v170 = vpop.f32.mrf.mxu0
    %v171 = vadd.f32 0.0, %v170
    %v172 = vpop.f32.mrf.mxu0
    %173 = vdwg.mxu0
    %vm174 = vcmask 130048
    %v176 = vsel %vm174, %v95, 0
    %178 = vmatprep.subr.mxu0 0.0
    %179 = vmatpush1.msra.mxu0 0.0
    %180 = vmatprep.subr.mxu0 0.0
    %181 = vmatpush1.msra.mxu0 0.0
    %182 = vmatprep.subr.mxu0 0.0
    %183 = vmatpush1.msra.mxu0 0.0
    %184 = vmatprep.subr.mxu0 0.0
    %185 = vmatpush1.msra.mxu0 0.0
    %186 = vmatprep.subr.mxu0 0.0
    %187 = vmatpush1.msra.mxu0 0.0
    %188 = vmatprep.subr.mxu0 0.0
    %189 = vmatpush1.msra.mxu0 0.0
    %190 = vmatprep.subr.mxu0 0.0
    %191 = vmatpush1.msra.mxu0 0.0
    %192 = vmatprep.subr.mxu0 0.0
    %193 = vmatpush1.msra.mxu0 0.0
    %194 = vmatprep.subr.mxu0 0.0
    %195 = vmatpush1.msra.mxu0 0.0
    %196 = vmatprep.subr.mxu0 0.0
    %197 = vmatpush1.msra.mxu0 0.0
    %198 = vmatprep.subr.mxu0 0.0
    %199 = vmatpush1.msra.mxu0 0.0
    %200 = vmatprep.subr.mxu0 0.0
    %201 = vmatpush1.msra.mxu0 0.0
    %202 = vmatprep.subr.mxu0 0.0
    %203 = vmatpush1.msra.mxu0 0.0
    %204 = vmatprep.subr.mxu0 0.0
    %205 = vmatpush1.msra.mxu0 0.0
    %206 = vmatprep.subr.mxu0 0.0
    %207 = vmatpush1.msra.mxu0 %v97
    %208 = vmatprep.subr.mxu0 0.0
    %209 = vmatpush1.msra.mxu0 %v96
    %210 = vmatprep.subr.mxu0 0.0
    %211 = vmatpush2.msra.mxu0 0.0
    %212 = vmatprep.subr.mxu0 0.0
    %213 = vmatpush2.msra.mxu0 0.0
    %214 = vmatprep.subr.mxu0 0.0
    %215 = vmatpush2.msra.mxu0 0.0
    %216 = vmatprep.subr.mxu0 0.0
    %217 = vmatpush2.msra.mxu0 0.0
    %218 = vmatprep.subr.mxu0 0.0
    %219 = vmatpush2.msra.mxu0 0.0
    %220 = vmatprep.subr.mxu0 0.0
    %221 = vmatpush2.msra.mxu0 0.0
    %222 = vmatprep.subr.mxu0 0.0
    %223 = vmatpush2.msra.mxu0 0.0
    %224 = vmatprep.subr.mxu0 0.0
    %225 = vmatpush2.msra.mxu0 0.0
    %226 = vmatprep.subr.mxu0 0.0
    %227 = vmatpush2.msra.mxu0 0.0
    %228 = vmatprep.subr.mxu0 0.0
    %229 = vmatpush2.msra.mxu0 0.0
    %230 = vmatprep.subr.mxu0 0.0
    %231 = vmatpush2.msra.mxu0 0.0
    %232 = vmatprep.subr.mxu0 0.0
    %233 = vmatpush2.msra.mxu0 0.0
    %234 = vmatprep.subr.mxu0 0.0
    %235 = vmatpush2.msra.mxu0 0.0
    %236 = vmatprep.subr.mxu0 0.0
    %237 = vmatpush2.msra.mxu0 0.0
    %238 = vmatprep.subr.mxu0 0.0
    %239 = vmatpush2.msra.mxu0 0.0
    %240 = vmatprep.subr.mxu0 0.0
    %241 = vmatpush2.msra.mxu0 0.0
    %242 = vmatprep.mubr.f32.mxu0 0.0
    %243 = vmatmul.mubr.f32.gmra.mxu0 %v176
    %v244 = vpop.f32.mrf.mxu0
    %v245 = vadd.f32 %v171, %v244
    %v246 = vpop.f32.mrf.mxu0
    %247 = vdwg.mxu0
    %v248 = vld [vmem:[#allocation8] sm:$0x1]
    %v250 = vlaneseq
    %v251 = vshrl.u32 %v250, 7
    %v252 = vsub.s32 0, %v251
    %v253 = vrot.slane %v248, %v252
    %v255 = vadd.f32 %v245, %v253
    %v256 = vmax.f32 %v255, 0.0
    %v257 = vld [vmem:[#allocation10] sm:$0xff]
    %v258 = vld [vmem:[#allocation10 + $0x8] sm:$0xff]
    %v259 = vld [vmem:[#allocation10 + $0x10] sm:$0xff]
    %v260 = vld [vmem:[#allocation10 + $0x18] sm:$0xff]
    %v261 = vld [vmem:[%s6] sm:$0x1]
    %v263 = vlaneseq
    %v264 = vshrl.u32 %v263, 7
    %v265 = vsub.s32 0, %v264
    %v266 = vrot.slane %v261, %v265
    %vm268 = vcmask 261120
    %v270 = vsel %vm268, %v256, 0
    %272 = vmatprep.subr.mxu0 0.0
    %273 = vmatpush1.msra.mxu0 0.0
    %274 = vmatprep.subr.mxu0 0.0
    %275 = vmatpush1.msra.mxu0 0.0
    %276 = vmatprep.subr.mxu0 0.0
    %277 = vmatpush1.msra.mxu0 0.0
    %278 = vmatprep.subr.mxu0 0.0
    %279 = vmatpush1.msra.mxu0 0.0
    %280 = vmatprep.subr.mxu0 0.0
    %281 = vmatpush1.msra.mxu0 0.0
    %282 = vmatprep.subr.mxu0 0.0
    %283 = vmatpush1.msra.mxu0 0.0
    %284 = vmatprep.subr.mxu0 0.0
    %285 = vmatpush1.msra.mxu0 0.0
    %286 = vmatprep.subr.mxu0 0.0
    %287 = vmatpush1.msra.mxu0 0.0
    %288 = vmatprep.subr.mxu0 0.0
    %289 = vmatpush1.msra.mxu0 0.0
    %290 = vmatprep.subr.mxu0 0.0
    %291 = vmatpush1.msra.mxu0 0.0
    %292 = vmatprep.subr.mxu0 0.0
    %293 = vmatpush1.msra.mxu0 0.0
    %294 = vmatprep.subr.mxu0 0.0
    %295 = vmatpush1.msra.mxu0 0.0
    %296 = vmatprep.subr.mxu0 0.0
    %297 = vmatpush1.msra.mxu0 %v260
    %298 = vmatprep.subr.mxu0 0.0
    %299 = vmatpush1.msra.mxu0 %v259
    %300 = vmatprep.subr.mxu0 0.0
    %301 = vmatpush1.msra.mxu0 %v258
    %302 = vmatprep.subr.mxu0 0.0
    %303 = vmatpush1.msra.mxu0 %v257
    %304 = vmatprep.subr.mxu0 0.0
    %305 = vmatpush2.msra.mxu0 0.0
    %306 = vmatprep.subr.mxu0 0.0
    %307 = vmatpush2.msra.mxu0 0.0
    %308 = vmatprep.subr.mxu0 0.0
    %309 = vmatpush2.msra.mxu0 0.0
    %310 = vmatprep.subr.mxu0 0.0
    %311 = vmatpush2.msra.mxu0 0.0
    %312 = vmatprep.subr.mxu0 0.0
    %313 = vmatpush2.msra.mxu0 0.0
    %314 = vmatprep.subr.mxu0 0.0
    %315 = vmatpush2.msra.mxu0 0.0
    %316 = vmatprep.subr.mxu0 0.0
    %317 = vmatpush2.msra.mxu0 0.0
    %318 = vmatprep.subr.mxu0 0.0
    %319 = vmatpush2.msra.mxu0 0.0
    %320 = vmatprep.subr.mxu0 0.0
    %321 = vmatpush2.msra.mxu0 0.0
    %322 = vmatprep.subr.mxu0 0.0
    %323 = vmatpush2.msra.mxu0 0.0
    %324 = vmatprep.subr.mxu0 0.0
    %325 = vmatpush2.msra.mxu0 0.0
    %326 = vmatprep.subr.mxu0 0.0
    %327 = vmatpush2.msra.mxu0 0.0
    %328 = vmatprep.subr.mxu0 0.0
    %329 = vmatpush2.msra.mxu0 0.0
    %330 = vmatprep.subr.mxu0 0.0
    %331 = vmatpush2.msra.mxu0 0.0
    %332 = vmatprep.subr.mxu0 0.0
    %333 = vmatpush2.msra.mxu0 0.0
    %334 = vmatprep.subr.mxu0 0.0
    %335 = vmatpush2.msra.mxu0 0.0
    %336 = vmatprep.mubr.f32.mxu0 0.0
    %337 = vmatmul.mubr.f32.gmra.mxu0 %v270
    %v338 = vpop.f32.mrf.mxu0
    %v339 = vadd.f32 %v266, %v338
    %v340 = vpop.f32.mrf.mxu0
    %341 = vdwg.mxu0
    %v342 = vmax.f32 %v339, 0.0
    %v343 = vld [vmem:[%s7] sm:$0x3]
    %v344 = vld [vmem:[%s8] sm:$0x3]
    %346 = vset.pattern.permute.xlu0 0
    %347 = vperm.xlu0 %346, %v344
    %v348 = vpop.permute.xlu0 %347
    %v351 = vsel %vm268, %v343, 0
    %v354 = vsel %vm268, %v342, 0
    %356 = vmatprep.subr.mxu0 0.0
    %357 = vmatpush1.xpose.msra.mxu0 0.0
    %358 = vmatprep.subr.mxu0 0.0
    %359 = vmatpush1.xpose.msra.mxu0 0.0
    %360 = vmatprep.subr.mxu0 0.0
    %361 = vmatpush1.xpose.msra.mxu0 0.0
    %362 = vmatprep.subr.mxu0 0.0
    %363 = vmatpush1.xpose.msra.mxu0 0.0
    %364 = vmatprep.subr.mxu0 0.0
    %365 = vmatpush1.xpose.msra.mxu0 0.0
    %366 = vmatprep.subr.mxu0 0.0
    %367 = vmatpush1.xpose.msra.mxu0 0.0
    %368 = vmatprep.subr.mxu0 0.0
    %369 = vmatpush1.xpose.msra.mxu0 0.0
    %370 = vmatprep.subr.mxu0 0.0
    %371 = vmatpush1.xpose.msra.mxu0 0.0
    %372 = vmatprep.subr.mxu0 0.0
    %373 = vmatpush1.xpose.msra.mxu0 0.0
    %374 = vmatprep.subr.mxu0 0.0
    %375 = vmatpush1.xpose.msra.mxu0 0.0
    %376 = vmatprep.subr.mxu0 0.0
    %377 = vmatpush1.xpose.msra.mxu0 0.0
    %378 = vmatprep.subr.mxu0 0.0
    %379 = vmatpush1.xpose.msra.mxu0 0.0
    %380 = vmatprep.subr.mxu0 0.0
    %381 = vmatpush1.xpose.msra.mxu0 0.0
    %382 = vmatprep.subr.mxu0 0.0
    %383 = vmatpush1.xpose.msra.mxu0 0.0
    %384 = vmatprep.subr.mxu0 0.0
    %385 = vmatpush1.xpose.msra.mxu0 0.0
    %386 = vmatprep.subr.mxu0 0.0
    %387 = vmatpush1.xpose.msra.mxu0 %v354
    %388 = vmatprep.subr.mxu0 0.0
    %389 = vmatpush2.xpose.msra.mxu0 0.0
    %390 = vmatprep.subr.mxu0 0.0
    %391 = vmatpush2.xpose.msra.mxu0 0.0
    %392 = vmatprep.subr.mxu0 0.0
    %393 = vmatpush2.xpose.msra.mxu0 0.0
    %394 = vmatprep.subr.mxu0 0.0
    %395 = vmatpush2.xpose.msra.mxu0 0.0
    %396 = vmatprep.subr.mxu0 0.0
    %397 = vmatpush2.xpose.msra.mxu0 0.0
    %398 = vmatprep.subr.mxu0 0.0
    %399 = vmatpush2.xpose.msra.mxu0 0.0
    %400 = vmatprep.subr.mxu0 0.0
    %401 = vmatpush2.xpose.msra.mxu0 0.0
    %402 = vmatprep.subr.mxu0 0.0
    %403 = vmatpush2.xpose.msra.mxu0 0.0
    %404 = vmatprep.subr.mxu0 0.0
    %405 = vmatpush2.xpose.msra.mxu0 0.0
    %406 = vmatprep.subr.mxu0 0.0
    %407 = vmatpush2.xpose.msra.mxu0 0.0
    %408 = vmatprep.subr.mxu0 0.0
    %409 = vmatpush2.xpose.msra.mxu0 0.0
    %410 = vmatprep.subr.mxu0 0.0
    %411 = vmatpush2.xpose.msra.mxu0 0.0
    %412 = vmatprep.subr.mxu0 0.0
    %413 = vmatpush2.xpose.msra.mxu0 0.0
    %414 = vmatprep.subr.mxu0 0.0
    %415 = vmatpush2.xpose.msra.mxu0 0.0
    %416 = vmatprep.subr.mxu0 0.0
    %417 = vmatpush2.xpose.msra.mxu0 0.0
    %418 = vmatprep.subr.mxu0 0.0
    %419 = vmatpush2.xpose.msra.mxu0 0.0
    %420 = vmatprep.mubr.f32.mxu0 0.0
    %421 = vmatmul.mubr.f32.gmra.mxu0 %v351
    %v422 = vpop.f32.mrf.mxu0
    %v423 = vadd.f32 %v348, %v422
    %v424 = vpop.f32.mrf.mxu0
    %425 = vdwg.mxu0
    %v426 = vmax.f32 %v423, 0.0
    %v427 = vand.u32 2147483647, %v423
    %v428 = vsub.f32 0.0, %v427
    %v429 = vmul.f32 %v428, 1.442695
    %v430 = vpow.pop %v429
    %v431 = vadd.f32 %v430, 1.0
    %v432 = vlog2.pop %v431
    %v433 = vmul.f32 %v432, 0.6931472
    %v434 = vmul.f32 -0.5, %v430
    %v435 = vadd.f32 %v434, 1.0
    %v436 = vmul.f32 %v435, %v430
    %v437 = vand.u32 2147483647, %v430
    %vm438 = vcmp.lt.f32.partialorder %v437, 0.0004427343
    %v439 = vsel %vm438, %v436, %v433
    %v440 = vadd.f32 %v426, %v439
    %v441 = vlaneseq
    %v442 = vshrl.u32 %v441, 7
    %vm443 = vcmp.eq.s32.totalorder %v442, 0
    %v444 = vsel %vm443, %v423, %v440
    %vm445 = vcmask 58368
    %446 = vst.msk [vmem:[#allocation11] sm:$0x3] %vm445, %v444
    // Predicated region
    $region58: #{tpu_custom_call.1} parent=1 // pred_check
      _
    $region59: #{tpu_custom_call.1} parent=1 // pred_check_branch
      %448 = sbr.rel (0) target = $region61
    $region60: #{tpu_custom_call.1} parent=1 // pred_region
      %s450 = ssub.s32 32, 32
      %451 = vsyncadd [#allocation4], %s450
      %s453 = sshll.u32 [#allocation11], 4
      %s454 = int_to_ptr.vmem [resolvable:$true] %s453
      %456 = dma.vmem_to_hbm [thread:$0]  %s454, 32, %s9, [#allocation4]
    $region61: #{tpu_custom_call.1} parent=1 // pred_fallthru
      _
    // Predicated region
    $region62: #{tpu_custom_call.1} parent=1 // pred_check
      _
    $region63: #{tpu_custom_call.1} parent=1 // pred_check_branch
      %458 = sbr.rel (0) target = $region65
    $region64: #{tpu_custom_call.1} parent=1 // pred_region
      %459 = dma.done [#allocation4], 32
    $region65: #{tpu_custom_call.1} parent=1 // pred_fallthru
      _
    %460 = vsyncpa [#allocation3], 1
    %461 = vsyncpa [#allocation6], 1
    %462 = vsyncpa [#allocation9], 1
    %463 = vsyncpa [#allocation4], 1

</llo_original>
